<compile_context>
chip_gen: v5e
topology: v5e:2x2
jax: 0.10.0
libtpu: 0.0.40
codegen_flags: <defaults>
</compile_context>

<pallas_src>
import math
from functools import partial

import jax
import jax.numpy as jnp
from jax.experimental import pallas as pl
from jax.experimental.pallas import tpu as pltpu


def _gelu_tanh(x):
    # PyTorch nn.GELU(approximate='tanh'):
    #   0.5 * x * (1 + tanh(sqrt(2/pi) * (x + 0.044715 * x^3)))
    c = math.sqrt(2.0 / math.pi)
    return 0.5 * x * (1.0 + jnp.tanh(c * (x + 0.044715 * x * x * x)))


def mlp_kernel(x_ref, w1_ref, b1_ref, w2_ref, b2_ref, o_ref, acc_ref, *,
               lowp_gelu):
    h_idx = pl.program_id(1)

    @pl.when(h_idx == 0)
    def _init():
        # Seed the resident accumulator with bias2 (saves a (TM, E) add later).
        acc_ref[...] = jnp.broadcast_to(b2_ref[...], acc_ref.shape)

    # fc1 partial: (TM, E) @ (E, TH) on the MXU, f32 accumulation.  The x tile
    # is cast to the weight dtype so bf16 weights give a true bf16 MXU matmul.
    h = jnp.dot(x_ref[...].astype(w1_ref.dtype), w1_ref[...],
                preferred_element_type=jnp.float32)
    h = h + b1_ref[...]                      # bias add stays in f32
    if lowp_gelu:
        # bf16 GELU halves VPU work and the (TM, TH) intermediate footprint.
        h = _gelu_tanh(h.astype(w2_ref.dtype))
    else:
        h = _gelu_tanh(h).astype(w2_ref.dtype)
    # fc2 partial: (TM, TH) @ (TH, E), accumulated into the resident f32 scratch.
    acc_ref[...] += jnp.dot(h, w2_ref[...], preferred_element_type=jnp.float32)

    @pl.when(h_idx == pl.num_programs(1) - 1)
    def _finalize():
        o_ref[...] = acc_ref[...].astype(o_ref.dtype)


def _round_up(x, m):
    return ((x + m - 1) // m) * m


def _cdiv(a, b):
    return -(-a // b)


def _vmem_budget_bytes():
    cap = 64 * 1024 * 1024            # conservative default = v7x per-TC VMEM
    try:
        info = pltpu.get_tpu_info()
        cap = int(getattr(info, "vmem_capacity_bytes", cap) or cap)
    except Exception:
        pass
    # ~15% headroom for compiler scratch / spills:
    #   64 MiB (v7x) -> ~54 MiB, 128 MiB (v5e/v6e) -> ~108 MiB.
    return int(cap * 0.85)


def _pick_tm(M, tm_pref, row_align):
    if M <= tm_pref:
        # A single M tile would leave one v7x TensorCore idle on the "parallel"
        # axis; split into two tiles whenever there are enough rows.
        n_t = 2 if M >= 2 * row_align else 1
    else:
        n_t = _cdiv(M, tm_pref)
    tm = _round_up(_cdiv(M, n_t), row_align)
    # Prefer MXU-shaped (multiple-of-256) tiles when padding waste stays small.
    if tm > 256:
        tm256 = _round_up(tm, 256)
        if _round_up(M, tm256) - M <= tm256 // 4:
            tm = tm256
    return tm


def mlp_forward(x, w1, b1, w2, b2, *, compute_dtype=jnp.bfloat16,
                tm_pref=None, th_pref=None):
    """Fused MLP forward.

    x: (B, S, E); w1: (E, H); b1: (1, H) or (H,); w2: (H, E); b2: (1, E) or (E,).

    compute_dtype is the MXU operand dtype (accumulation is always f32).  bf16
    is the fast path on all TPU generations; pass jnp.float32 for exact parity
    with an f32 reference.  th_pref < H forces hidden-axis streaming (mostly a
    test hook); by default weights stay VMEM-resident whenever they fit.
    """
    B, S, E = x.shape
    H = w1.shape[1]
    M = B * S

    cdtype = jnp.dtype(compute_dtype)
    w_isz = cdtype.itemsize
    x_isz = jnp.dtype(x.dtype).itemsize
    out_isz = x_isz

    # MXU operands in compute dtype; biases stay f32 (VPU adds, not MXU).
    w1c = w1.astype(cdtype)
    w2c = w2.astype(cdtype)
    b1c = b1.reshape(1, -1).astype(jnp.float32)
    b2c = b2.reshape(1, -1).astype(jnp.float32)

    # --- M-tile selection (dtype / MXU aware) ------------------------------
    isz_min = max(1, min(x_isz, w_isz))
    row_align = max(8, 32 // isz_min)            # 8 (f32) / 16 (bf16) / 32 (8-bit)
    if tm_pref is None:
        tm_pref = 1024 if w_isz <= 2 else 512    # streamed-weights roofline TM
    TM = _pick_tm(M, tm_pref, row_align)
    M_pad = _round_up(M, TM)
    n_m = M_pad // TM

    # --- hidden-tile selection: resident weights if they fit VMEM ----------
    budget = _vmem_budget_bytes()

    def _need(tm, th):
        # double-buffered pipelined blocks + resident scratch + f32 intermediate
        return (2 * tm * E * x_isz                 # x tiles
                + 2 * tm * E * out_isz             # out tiles
                + 2 * (E * th + th * E) * w_isz    # w1 + w2 tiles
                + 2 * (th + E) * 4                 # b1 + b2 tiles (f32)
                + tm * E * 4                       # resident f32 accumulator
                + tm * th * 4)                     # fc1/GELU intermediate headroom

    H128 = _round_up(H, 128)
    if th_pref is not None and th_pref < H:
        TH = min(_round_up(th_pref, 128), H128)
    elif _need(TM, H) <= budget:
        TH = H                                     # resident: weights DMA'd once
    else:
        th = 2048
        while th > 128 and _need(TM, th) > budget:
            th //= 2
        n_h_t = _cdiv(H128, th)
        TH = _round_up(_cdiv(H128, n_h_t), 128)

    H_pad = _round_up(H, TH)
    n_h = H_pad // TH

    # --- padding ------------------------------------------------------------
    x2d = x.reshape(M, E)
    if M_pad != M:
        x2d = jnp.pad(x2d, ((0, M_pad - M), (0, 0)))
    if H_pad != H:
        w1c = jnp.pad(w1c, ((0, 0), (0, H_pad - H)))
        b1c = jnp.pad(b1c, ((0, 0), (0, H_pad - H)))
        w2c = jnp.pad(w2c, ((0, H_pad - H), (0, 0)))

    # --- VMEM limit (no 2x hedge; generation-aware cap) ---------------------
    need = _need(TM, TH)
    vmem_limit = int(min(max(need * 5 // 4, 32 * 1024 * 1024),
                         max(budget, 32 * 1024 * 1024)))

    # --- cost estimate (counts per-M-tile weight re-streaming) --------------
    weight_passes = n_m if n_h > 1 else 1
    cost = pl.CostEstimate(
        flops=4 * M * E * H,                       # fc1 + fc2
        transcendentals=M * H,                     # tanh per hidden activation
        bytes_accessed=int(M_pad * E * (x_isz + out_isz)
                           + weight_passes * 2 * E * H_pad * w_isz
                           + (H_pad + E) * 4),
    )

    kernel = partial(mlp_kernel, lowp_gelu=bool(w_isz < 4))

    out2d = pl.pallas_call(
        kernel,
        out_shape=jax.ShapeDtypeStruct((M_pad, E), x.dtype),
        grid_spec=pltpu.PrefetchScalarGridSpec(
            num_scalar_prefetch=0,
            grid=(n_m, n_h),
            in_specs=[
                pl.BlockSpec((TM, E), lambda m, h: (m, 0)),   # x
                # If profiling shows DMA bubbles at m-tile boundaries in the
                # streamed (n_h > 1) case, add pipeline_mode=pl.Buffered(3)
                # to the two weight specs below.
                pl.BlockSpec((E, TH), lambda m, h: (0, h)),   # w1
                pl.BlockSpec((1, TH), lambda m, h: (0, h)),   # b1
                pl.BlockSpec((TH, E), lambda m, h: (h, 0)),   # w2
                pl.BlockSpec((1, E), lambda m, h: (0, 0)),    # b2
            ],
            out_specs=pl.BlockSpec((TM, E), lambda m, h: (m, 0)),
            scratch_shapes=[pltpu.VMEM((TM, E), jnp.float32)],
        ),
        compiler_params=pltpu.CompilerParams(
            dimension_semantics=("parallel", "arbitrary"),
            vmem_limit_bytes=vmem_limit,
        ),
        cost_estimate=cost,
    )(x2d, w1c, b1c, w2c, b2c)

    return out2d[:M].reshape(B, S, E)


def init_params(key, n_embd, mlp_ratio, dtype=jnp.float32):
    """torch.nn.Linear-style init (uniform +/- 1/sqrt(fan_in)); weights stored
    transposed relative to PyTorch: (in_features, out_features)."""
    hidden = n_embd * mlp_ratio
    k1, k2, k3, k4 = jax.random.split(key, 4)
    bound1 = 1.0 / math.sqrt(n_embd)
    bound2 = 1.0 / math.sqrt(hidden)
    w1 = jax.random.uniform(k1, (n_embd, hidden), dtype, -bound1, bound1)
    b1 = jax.random.uniform(k2, (1, hidden), dtype, -bound1, bound1)
    w2 = jax.random.uniform(k3, (hidden, n_embd), dtype, -bound2, bound2)
    b2 = jax.random.uniform(k4, (1, n_embd), dtype, -bound2, bound2)
    return w1, b1, w2, b2


def mlp_reference(x, w1, b1, w2, b2):
    h = x @ w1 + b1
    h = _gelu_tanh(h)
    return h @ w2 + b2


if __name__ == "__main__":
    # --- small shape consistent with the module ----------------------------
    batch, seq, n_embd, mlp_ratio = 2, 8, 32, 4
    key = jax.random.PRNGKey(0)
    kx, kp = jax.random.split(key)

    x = jax.random.normal(kx, (batch, seq, n_embd), dtype=jnp.float32)
    w1, b1, w2, b2 = init_params(kp, n_embd, mlp_ratio)
    ref = mlp_reference(x, w1, b1, w2, b2)

    # (1) exact f32 path (tight tolerance; also exercises the small-M 2-tile split)
    out = jax.block_until_ready(
        mlp_forward(x, w1, b1, w2, b2, compute_dtype=jnp.float32))
    assert out.shape == (batch, seq, n_embd)
    assert jnp.allclose(out, ref, atol=1e-5, rtol=1e-5), "f32 mismatch vs reference"

    # (2) default bf16-MXU fast path (f32 accumulation) — looser tolerance
    out_bf = jax.block_until_ready(mlp_forward(x, w1, b1, w2, b2))
    assert out_bf.shape == (batch, seq, n_embd)
    assert out_bf.dtype == x.dtype
    assert jnp.allclose(out_bf, ref, atol=5e-2, rtol=5e-2), "bf16 path mismatch"

    # (3) exercise M padding + multi-tile M / streamed hidden-axis accumulation
    batch2, seq2, n_embd2, mlp_ratio2 = 3, 40, 256, 4    # M=120, H=1024
    k2x, k2p = jax.random.split(jax.random.PRNGKey(0), 2)
    x2 = jax.random.normal(k2x, (batch2, seq2, n_embd2), dtype=jnp.float32)
    p2 = init_params(k2p, n_embd2, mlp_ratio2)
    out2 = mlp_forward(x2, *p2, compute_dtype=jnp.float32,
                       tm_pref=64, th_pref=256)           # 2 M-tiles, 4 H-tiles
    out2 = jax.block_until_ready(out2)
    ref2 = mlp_reference(x2, *p2)
    assert out2.shape == (batch2, seq2, n_embd2)
    assert jnp.allclose(out2, ref2, atol=1e-4, rtol=1e-4), "tiled mismatch"

    print("KERNEL_OK")
</pallas_src>

<mosaic_0001>
module attributes {stable_mosaic.version = 11 : i64} {
  func.func @mlp_kernel(%arg0: i32, %arg1: i32, %arg2: memref<8x32xf32, #tpu.memory_space<vmem>>, %arg3: memref<32x128xf32, #tpu.memory_space<vmem>>, %arg4: memref<1x128xf32, #tpu.memory_space<vmem>>, %arg5: memref<128x32xf32, #tpu.memory_space<vmem>>, %arg6: memref<1x32xf32, #tpu.memory_space<vmem>>, %arg7: memref<8x32xf32, #tpu.memory_space<vmem>>, %arg8: memref<8x32xf32, #tpu.memory_space<vmem>>) attributes {dimension_semantics = [#tpu.dimension_semantics<parallel>, #tpu.dimension_semantics<arbitrary>], iteration_bounds = array<i64: 2, 1>, scalar_prefetch = 0 : i64, scratch_operands = 1 : i64, tpu.core_type = #tpu.core_type<tc>, window_params = [{transform_indices = @transform_0, window_bounds = array<i64: 8, 32>}, {transform_indices = @transform_1, window_bounds = array<i64: 32, 128>}, {transform_indices = @transform_2, window_bounds = array<i64: 1, 128>}, {transform_indices = @transform_3, window_bounds = array<i64: 128, 32>}, {pipeline_mode = #tpu.pipeline_mode<synchronous>, transform_indices = @transform_4, window_bounds = array<i64: 1, 32>}, {transform_indices = @transform_5, window_bounds = array<i64: 8, 32>}]} {
    %c0_i32 = arith.constant 0 : i32
    %0 = arith.cmpi eq, %arg1, %c0_i32 : i32
    %1 = arith.extui %0 : i1 to i32
    %c0_i32_0 = arith.constant 0 : i32
    %2 = arith.cmpi ne, %1, %c0_i32_0 : i32
    scf.if %2 {
      %c0_19 = arith.constant 0 : index
      %c0_20 = arith.constant 0 : index
      %30 = vector.load %arg6[%c0_19, %c0_20] : memref<1x32xf32, #tpu.memory_space<vmem>>, vector<1x32xf32>
      %31 = vector.shape_cast %30 : vector<1x32xf32> to vector<1x32xf32>
      %32 = vector.broadcast %31 : vector<1x32xf32> to vector<8x32xf32>
      %c0_21 = arith.constant 0 : index
      %c0_22 = arith.constant 0 : index
      %33 = vector.load %arg8[%c0_21, %c0_22] : memref<8x32xf32, #tpu.memory_space<vmem>>, vector<8x32xf32>
      tpu.vector_store %arg8[%c0_21, %c0_22], %32 {strides = array<i32>} : memref<8x32xf32, #tpu.memory_space<vmem>>, vector<8x32xf32>,
    } else {
    }
    %c0 = arith.constant 0 : index
    %c0_1 = arith.constant 0 : index
    %3 = vector.load %arg2[%c0, %c0_1] : memref<8x32xf32, #tpu.memory_space<vmem>>, vector<8x32xf32>
    %c0_2 = arith.constant 0 : index
    %c0_3 = arith.constant 0 : index
    %4 = vector.load %arg3[%c0_2, %c0_3] : memref<32x128xf32, #tpu.memory_space<vmem>>, vector<32x128xf32>
    %cst = arith.constant dense<0.000000e+00> : vector<8x128xf32>
    %5 = tpu.matmul %3, %4, %cst {dimension_numbers = #tpu.dot_dimension_numbers<[1], [0], [0], [1], [0, 0, 1, 1], [], []>} : vector<8x32xf32>, vector<32x128xf32>, vector<8x128xf32> -> vector<8x128xf32>
    %c0_4 = arith.constant 0 : index
    %c0_5 = arith.constant 0 : index
    %6 = vector.load %arg4[%c0_4, %c0_5] : memref<1x128xf32, #tpu.memory_space<vmem>>, vector<1x128xf32>
    %7 = vector.broadcast %6 : vector<1x128xf32> to vector<8x128xf32>
    %8 = arith.addf %5, %7 : vector<8x128xf32>
    %cst_6 = arith.constant 5.000000e-01 : f32
    %9 = vector.broadcast %cst_6 : f32 to vector<8x128xf32>
    %10 = arith.mulf %9, %8 : vector<8x128xf32>
    %cst_7 = arith.constant 4.471500e-02 : f32
    %11 = vector.broadcast %cst_7 : f32 to vector<8x128xf32>
    %12 = arith.mulf %11, %8 : vector<8x128xf32>
    %13 = arith.mulf %12, %8 : vector<8x128xf32>
    %14 = arith.mulf %13, %8 : vector<8x128xf32>
    %15 = arith.addf %8, %14 : vector<8x128xf32>
    %cst_8 = arith.constant 0.797884583 : f32
    %16 = vector.broadcast %cst_8 : f32 to vector<8x128xf32>
    %17 = arith.mulf %16, %15 : vector<8x128xf32>
    %18 = math.tanh %17 : vector<8x128xf32>
    %cst_9 = arith.constant 1.000000e+00 : f32
    %19 = vector.broadcast %cst_9 : f32 to vector<8x128xf32>
    %20 = arith.addf %19, %18 : vector<8x128xf32>
    %21 = arith.mulf %10, %20 : vector<8x128xf32>
    %c0_10 = arith.constant 0 : index
    %c0_11 = arith.constant 0 : index
    %22 = vector.load %arg8[%c0_10, %c0_11] : memref<8x32xf32, #tpu.memory_space<vmem>>, vector<8x32xf32>
    %c0_12 = arith.constant 0 : index
    %c0_13 = arith.constant 0 : index
    %23 = vector.load %arg5[%c0_12, %c0_13] : memref<128x32xf32, #tpu.memory_space<vmem>>, vector<128x32xf32>
    %cst_14 = arith.constant dense<0.000000e+00> : vector<8x32xf32>
    %24 = tpu.matmul %21, %23, %cst_14 {dimension_numbers = #tpu.dot_dimension_numbers<[1], [0], [0], [1], [0, 0, 1, 1], [], []>} : vector<8x128xf32>, vector<128x32xf32>, vector<8x32xf32> -> vector<8x32xf32>
    %25 = arith.addf %22, %24 : vector<8x32xf32>
    %c0_15 = arith.constant 0 : index
    %c0_16 = arith.constant 0 : index
    %26 = vector.load %arg8[%c0_15, %c0_16] : memref<8x32xf32, #tpu.memory_space<vmem>>, vector<8x32xf32>
    tpu.vector_store %arg8[%c0_15, %c0_16], %25 {strides = array<i32>} : memref<8x32xf32, #tpu.memory_space<vmem>>, vector<8x32xf32>,
    %c0_i32_17 = arith.constant 0 : i32
    %27 = arith.cmpi eq, %arg1, %c0_i32_17 : i32
    %28 = arith.extui %27 : i1 to i32
    %c0_i32_18 = arith.constant 0 : i32
    %29 = arith.cmpi ne, %28, %c0_i32_18 : i32
    scf.if %29 {
      %c0_19 = arith.constant 0 : index
      %c0_20 = arith.constant 0 : index
      %30 = vector.load %arg8[%c0_19, %c0_20] : memref<8x32xf32, #tpu.memory_space<vmem>>, vector<8x32xf32>
      %c0_21 = arith.constant 0 : index
      %c0_22 = arith.constant 0 : index
      %31 = vector.load %arg7[%c0_21, %c0_22] : memref<8x32xf32, #tpu.memory_space<vmem>>, vector<8x32xf32>
      tpu.vector_store %arg7[%c0_21, %c0_22], %30 {strides = array<i32>} : memref<8x32xf32, #tpu.memory_space<vmem>>, vector<8x32xf32>,
    } else {
    }
    return
  }
  func.func @transform_0(%arg0: i32, %arg1: i32) -> (i32, i32) {
    %c0_i32 = arith.constant 0 : i32
    %c0_i32_0 = arith.constant 0 : i32
    return %arg0, %c0_i32 : i32, i32
  }
  func.func @transform_1(%arg0: i32, %arg1: i32) -> (i32, i32) {
    %c0_i32 = arith.constant 0 : i32
    %c0_i32_0 = arith.constant 0 : i32
    return %c0_i32, %arg1 : i32, i32
  }
  func.func @transform_2(%arg0: i32, %arg1: i32) -> (i32, i32) {
    %c0_i32 = arith.constant 0 : i32
    %c0_i32_0 = arith.constant 0 : i32
    return %c0_i32, %arg1 : i32, i32
  }
  func.func @transform_3(%arg0: i32, %arg1: i32) -> (i32, i32) {
    %c0_i32 = arith.constant 0 : i32
    %c0_i32_0 = arith.constant 0 : i32
    return %arg1, %c0_i32 : i32, i32
  }
  func.func @transform_4(%arg0: i32, %arg1: i32) -> (i32, i32) {
    %c0_i32 = arith.constant 0 : i32
    %c0_i32_0 = arith.constant 0 : i32
    %c0_i32_1 = arith.constant 0 : i32
    return %c0_i32, %c0_i32_0 : i32, i32
  }
  func.func @transform_5(%arg0: i32, %arg1: i32) -> (i32, i32) {
    %c0_i32 = arith.constant 0 : i32
    %c0_i32_0 = arith.constant 0 : i32
    return %arg0, %c0_i32 : i32, i32
  }
}

</mosaic_0001>

<llo_original>
// kernel: tpu_custom_call.1
$region0: #{tpu_custom_call.1}
  #allocation0 [shape = 'u32[]', space=smem, size = 0x4, offset = 0x4, fixed_abs, tag = 'smem constant byte address 0x4 - core index']
  #allocation1 [shape = 'u32[72,128]{1,0:T(1,128)}', space=vmem, size = 0x9000, scoped, tag = 'internal scratch']
  #allocation2 [shape = 'f32[8,32]{1,0:T(8,128)}', space=vmem, size = 0x1000, scoped, tag = 'scratch operand']
  %s0 = inlined_call_operand.vmem [shape: f32[16,32], index: 0, kind: input, shape index: {}]
  %s1 = inlined_call_operand.vmem [shape: f32[32,128], index: 1, kind: input, shape index: {}]
  %s2 = inlined_call_operand.vmem [shape: f32[1,128], index: 2, kind: input, shape index: {}]
  %s3 = inlined_call_operand.vmem [shape: f32[128,32], index: 3, kind: input, shape index: {}]
  %s4 = inlined_call_operand.vmem [shape: f32[1,32], index: 4, kind: input, shape index: {}]
  %s5 = inlined_call_operand.hbm [shape: f32[16,32], index: 5, kind: output, shape index: {}]
  %s6 = sld [smem:[#allocation0]]
  $region61: #{tpu_custom_call.1} parent=0
    _
  %s8 = ssub.s32 1, %s6
  %s9 = scalar_select 0, %s8, %s6
  $region1: #{tpu_custom_call.1} parent=0
    #allocation3 [shape = 'u8[8192]{0}', space=vmem, size = 0x2000, scoped, tag = 'output window, operand 0']
    #allocation4 [shape = 's32[2]{0}', space=sflag, size = 0x8, scoped, tag = 'scoped memory for tpu_custom_call.1']
    %10 = vsyncpa [#allocation4], 0
    %s11 = scalar_lea.sflag [#allocation4], 1
    %12 = vsyncpa %s11, 0
    loop: start=0, step=1, limit=4
    $region2: #{tpu_custom_call.1} parent=1 // loop_pre_header
      _
    $region3: #{tpu_custom_call.1} parent=1 // loop_header
      %s14 = sphi 0, %s18
      %p15 = scmp.ge.s32.totalorder %s14, 4
      %s21 = sphi 0, %s33
      %s22 = sphi 0, %s29
      %s23 = sphi 0, %s21
      %s24 = sphi 0, %s22
      %s25 = sphi 0, %s23
      %s26 = sphi 0, %s24
      %s36 = sphi 0, %s38
      %s39 = sphi 0, %s36
      %s40 = sphi 0, %s39
      %s56 = sphi 0, %s40
      %s62 = sphi 0, %s64
      %s65 = sphi 0, %s62
      %s66 = sphi 0, %s65
      %s82 = sphi 0, %s66
      %s88 = sphi 0, %s90
      %s91 = sphi 0, %s88
      %s92 = sphi 0, %s91
      %s108 = sphi 0, %s92
      %s114 = sphi 0, %s116
      %s117 = sphi 0, %s114
      %s118 = sphi 0, %s117
      %s134 = sphi 0, %s118
      %s138 = sphi 0, %s138
      %s140 = sphi 0, %s138
      %s141 = sphi 0, %s140
      %s155 = sphi 0, %s141
      %s161 = sphi 0, %s163
      %s164 = sphi 0, %s161
      %s165 = sphi 0, %s164
      %s181 = sphi 0, %s165
    $region4: #{tpu_custom_call.1} parent=1 // loop_header_branch
      %17 = sbr.rel (%p15) target = $region8
    $region5: #{tpu_custom_call.1} parent=1 // loop_body
      %s19 = ssub.s32 %s14, 1
      %s20 = ssub.s32 %s14, 2
      %s27 = sadd.s32 1, %s22
      %p28 = scmp.ge.s32.totalorder %s27, 1
      %s29 = scalar_select %p28, 0, %s27
      %s30 = sadd.s32 1, %s21
      %s31 = scalar_select %p28, %s30, %s21
      %p32 = scmp.ge.s32.totalorder %s31, 2
      %s33 = scalar_select %p32, 0, %s31
      %s34 = ssub.s32 %s21, %s33
      %p35 = scmp.eq.s32.totalorder %s34, 0
      %s37 = sadd.s32 %s36, 1
      %s38 = scalar_select %p35, %s36, %s37
      %p41 = pneg %p35
      %p42 = scmp.eq.s32.totalorder %s14, 1
      %p43 = por %p41, %p42
      %p44 = scmp.ne.s32.totalorder %s36, %s39
      %p45 = scmp.eq.s32.totalorder %s14, 0
      %p46 = por %p44, %p45
      %p47 = scmp.ne.s32.totalorder %s36, %s39
      %p48 = scmp.eq.s32.totalorder %s19, 1
      %p49 = por %p47, %p48
      %p50 = scmp.ne.s32.totalorder %s39, %s40
      %p51 = scmp.eq.s32.totalorder %s19, 0
      %p52 = por %p50, %p51
      %p53 = scmp.ne.s32.totalorder %s39, %s40
      %p54 = scmp.eq.s32.totalorder %s20, 1
      %p55 = por %p53, %p54
      %p57 = scmp.ne.s32.totalorder %s40, %s56
      %p58 = scmp.eq.s32.totalorder %s20, 0
      %p59 = por %p57, %p58
      %s60 = ssub.s32 %s22, %s29
      %p61 = scmp.eq.s32.totalorder %s60, 0
      %s63 = sadd.s32 %s62, 1
      %s64 = scalar_select %p61, %s62, %s63
      %p67 = pneg %p61
      %p68 = scmp.eq.s32.totalorder %s14, 1
      %p69 = por %p67, %p68
      %p70 = scmp.ne.s32.totalorder %s62, %s65
      %p71 = scmp.eq.s32.totalorder %s14, 0
      %p72 = por %p70, %p71
      %p73 = scmp.ne.s32.totalorder %s62, %s65
      %p74 = scmp.eq.s32.totalorder %s19, 1
      %p75 = por %p73, %p74
      %p76 = scmp.ne.s32.totalorder %s65, %s66
      %p77 = scmp.eq.s32.totalorder %s19, 0
      %p78 = por %p76, %p77
      %p79 = scmp.ne.s32.totalorder %s65, %s66
      %p80 = scmp.eq.s32.totalorder %s20, 1
      %p81 = por %p79, %p80
      %p83 = scmp.ne.s32.totalorder %s66, %s82
      %p84 = scmp.eq.s32.totalorder %s20, 0
      %p85 = por %p83, %p84
      %s86 = ssub.s32 %s22, %s29
      %p87 = scmp.eq.s32.totalorder %s86, 0
      %s89 = sadd.s32 %s88, 1
      %s90 = scalar_select %p87, %s88, %s89
      %p93 = pneg %p87
      %p94 = scmp.eq.s32.totalorder %s14, 1
      %p95 = por %p93, %p94
      %p96 = scmp.ne.s32.totalorder %s88, %s91
      %p97 = scmp.eq.s32.totalorder %s14, 0
      %p98 = por %p96, %p97
      %p99 = scmp.ne.s32.totalorder %s88, %s91
      %p100 = scmp.eq.s32.totalorder %s19, 1
      %p101 = por %p99, %p100
      %p102 = scmp.ne.s32.totalorder %s91, %s92
      %p103 = scmp.eq.s32.totalorder %s19, 0
      %p104 = por %p102, %p103
      %p105 = scmp.ne.s32.totalorder %s91, %s92
      %p106 = scmp.eq.s32.totalorder %s20, 1
      %p107 = por %p105, %p106
      %p109 = scmp.ne.s32.totalorder %s92, %s108
      %p110 = scmp.eq.s32.totalorder %s20, 0
      %p111 = por %p109, %p110
      %s112 = ssub.s32 %s22, %s29
      %p113 = scmp.eq.s32.totalorder %s112, 0
      %s115 = sadd.s32 %s114, 1
      %s116 = scalar_select %p113, %s114, %s115
      %p119 = pneg %p113
      %p120 = scmp.eq.s32.totalorder %s14, 1
      %p121 = por %p119, %p120
      %p122 = scmp.ne.s32.totalorder %s114, %s117
      %p123 = scmp.eq.s32.totalorder %s14, 0
      %p124 = por %p122, %p123
      %p125 = scmp.ne.s32.totalorder %s114, %s117
      %p126 = scmp.eq.s32.totalorder %s19, 1
      %p127 = por %p125, %p126
      %p128 = scmp.ne.s32.totalorder %s117, %s118
      %p129 = scmp.eq.s32.totalorder %s19, 0
      %p130 = por %p128, %p129
      %p131 = scmp.ne.s32.totalorder %s117, %s118
      %p132 = scmp.eq.s32.totalorder %s20, 1
      %p133 = por %p131, %p132
      %p135 = scmp.ne.s32.totalorder %s118, %s134
      %p136 = scmp.eq.s32.totalorder %s20, 0
      %p137 = por %p135, %p136
      %s139 = sadd.s32 %s138, 1
      %p142 = scmp.eq.s32.totalorder %s14, 1
      %p143 = scmp.ne.s32.totalorder %s138, %s140
      %p144 = scmp.eq.s32.totalorder %s14, 0
      %p145 = por %p143, %p144
      %p146 = scmp.ne.s32.totalorder %s138, %s140
      %p147 = scmp.eq.s32.totalorder %s19, 1
      %p148 = por %p146, %p147
      %p149 = scmp.ne.s32.totalorder %s140, %s141
      %p150 = scmp.eq.s32.totalorder %s19, 0
      %p151 = por %p149, %p150
      %p152 = scmp.ne.s32.totalorder %s140, %s141
      %p153 = scmp.eq.s32.totalorder %s20, 1
      %p154 = por %p152, %p153
      %p156 = scmp.ne.s32.totalorder %s141, %s155
      %p157 = scmp.eq.s32.totalorder %s20, 0
      %p158 = por %p156, %p157
      %s159 = ssub.s32 %s21, %s33
      %p160 = scmp.eq.s32.totalorder %s159, 0
      %s162 = sadd.s32 %s161, 1
      %s163 = scalar_select %p160, %s161, %s162
      %p166 = pneg %p160
      %p167 = scmp.eq.s32.totalorder %s14, 1
      %p168 = por %p166, %p167
      %p169 = scmp.ne.s32.totalorder %s161, %s164
      %p170 = scmp.eq.s32.totalorder %s14, 0
      %p171 = por %p169, %p170
      %p172 = scmp.ne.s32.totalorder %s161, %s164
      %p173 = scmp.eq.s32.totalorder %s19, 1
      %p174 = por %p172, %p173
      %p175 = scmp.ne.s32.totalorder %s164, %s165
      %p176 = scmp.eq.s32.totalorder %s19, 0
      %p177 = por %p175, %p176
      %p178 = scmp.ne.s32.totalorder %s164, %s165
      %p179 = scmp.eq.s32.totalorder %s20, 1
      %p180 = por %p178, %p179
      %p182 = scmp.ne.s32.totalorder %s165, %s181
      %p183 = scmp.eq.s32.totalorder %s20, 0
      %p184 = por %p182, %p183
      %p185 = scmp.le.s32.totalorder 1, %s14
      %p186 = scmp.lt.s32.totalorder %s14, 3
      %p187 = pnand %p185, %p186
      %p188 = pneg %p187
      // Predicated region
      $region9: #{tpu_custom_call.1} parent=5 // pred_check
        _
      $region10: #{tpu_custom_call.1} parent=5 // pred_check_branch
        %190 = sbr.rel (%p187) target = $region12
      $region11: #{tpu_custom_call.1} parent=5 // pred_region
        %s191 = ssub.s32 %s14, 1
        // Predicated region
        $region13: #{tpu_custom_call.1} parent=11 // pred_check
          %p192 = pneg %p78
        $region14: #{tpu_custom_call.1} parent=11 // pred_check_branch
          %194 = sbr.rel (%p192) target = $region16
        $region15: #{tpu_custom_call.1} parent=11 // pred_region
          %p195 = scmp.lt.s32.totalorder %s24, 0
          %s196 = scalar_select %p195, %s24, 0
          %s197 = smul.addr %s196, 8
          %s198 = scalar_lea.vmem %s1, %s197
        $region16: #{tpu_custom_call.1} parent=11 // pred_fallthru
          _
        // Predicated region
        $region17: #{tpu_custom_call.1} parent=11 // pred_check
          %p199 = pneg %p104
        $region18: #{tpu_custom_call.1} parent=11 // pred_check_branch
          %201 = sbr.rel (%p199) target = $region20
        $region19: #{tpu_custom_call.1} parent=11 // pred_region
          %p202 = scmp.lt.s32.totalorder %s24, 0
          %s203 = scalar_select %p202, %s24, 0
          %s204 = scalar_lea.vmem %s2, %s203
        $region20: #{tpu_custom_call.1} parent=11 // pred_fallthru
          _
        // Predicated region
        $region21: #{tpu_custom_call.1} parent=11 // pred_check
          %p205 = pneg %p130
        $region22: #{tpu_custom_call.1} parent=11 // pred_check_branch
          %207 = sbr.rel (%p205) target = $region24
        $region23: #{tpu_custom_call.1} parent=11 // pred_region
          %s208 = smul.u32 16, %s24
          %p209 = scmp.lt.s32.totalorder %s208, 15
          %s210 = scalar_select %p209, %s208, 15
          %s211 = smul.addr %s210, 8
          %s212 = scalar_lea.vmem %s3, %s211
          %s213 = smul.u32 16, %s24
        $region24: #{tpu_custom_call.1} parent=11 // pred_fallthru
          _
        // Predicated region
        $region25: #{tpu_custom_call.1} parent=11 // pred_check
          %p214 = pneg %p151
        $region26: #{tpu_custom_call.1} parent=11 // pred_check_branch
          %216 = sbr.rel (%p214) target = $region28
        $region27: #{tpu_custom_call.1} parent=11 // pred_region
          _
        $region28: #{tpu_custom_call.1} parent=11 // pred_fallthru
          _
      $region12: #{tpu_custom_call.1} parent=5 // pred_fallthru
        _
      %p217 = scmp.lt.s32.totalorder %s14, 2
      // Predicated region
      $region29: #{tpu_custom_call.1} parent=5 // pred_check
        %p218 = pneg %p217
      $region30: #{tpu_custom_call.1} parent=5 // pred_check_branch
        %220 = sbr.rel (%p218) target = $region32
      $region31: #{tpu_custom_call.1} parent=5 // pred_region
        // Predicated region
        $region33: #{tpu_custom_call.1} parent=31 // pred_check
          %p221 = pneg %p46
        $region34: #{tpu_custom_call.1} parent=31 // pred_check_branch
          %223 = sbr.rel (%p221) target = $region36
        $region35: #{tpu_custom_call.1} parent=31 // pred_region
          %p224 = scmp.lt.s32.totalorder %s21, 1
          %s225 = scalar_select %p224, %s21, 1
          %s226 = smul.addr %s225, 8
          %s227 = scalar_lea.vmem %s0, %s226
        $region36: #{tpu_custom_call.1} parent=31 // pred_fallthru
          _
      $region32: #{tpu_custom_call.1} parent=5 // pred_fallthru
        _
      %p228 = scmp.le.s32.totalorder 1, %s14
      %p229 = scmp.lt.s32.totalorder %s14, 3
      %p230 = pnand %p228, %p229
      %p231 = pneg %p230
      // Predicated region
      $region37: #{tpu_custom_call.1} parent=5 // pred_check
        _
      $region38: #{tpu_custom_call.1} parent=5 // pred_check_branch
        %233 = sbr.rel (%p230) target = $region40
      $region39: #{tpu_custom_call.1} parent=5 // pred_region
        %s234 = ssub.s32 %s14, 1
        %p235 = scmp.lt.s32.totalorder %s23, 1
        %s236 = scalar_select %p235, %s23, 1
        %s237 = smul.addr %s236, 8
        %s238 = scalar_lea.vmem %s0, %s237
        %p239 = pneg %p52
        %p240 = pneg %p49
        %p241 = scmp.lt.s32.totalorder %s24, 0
        %s242 = scalar_select %p241, %s24, 0
        %s243 = smul.addr %s242, 8
        %s244 = scalar_lea.vmem %s1, %s243
        %p245 = pneg %p78
        %p246 = pneg %p75
        %p247 = scmp.lt.s32.totalorder %s24, 0
        %s248 = scalar_select %p247, %s24, 0
        %s249 = scalar_lea.vmem %s2, %s248
        %p250 = pneg %p104
        %p251 = pneg %p101
        %s252 = smul.u32 16, %s24
        %p253 = scmp.lt.s32.totalorder %s252, 15
        %s254 = scalar_select %p253, %s252, 15
        %s255 = smul.addr %s254, 8
        %s256 = scalar_lea.vmem %s3, %s255
        %p257 = pneg %p130
        %p258 = pneg %p127
        %p259 = pneg %p151
        %p260 = pneg %p148
        %p261 = pneg %p177
        %p262 = pneg %p174
        %s263 = sand.u32 %s164, 1
        %s264 = scalar_lea.sflag [#allocation4], %s263
        %s265 = sand.u32 %s164, 1
        %s266 = smul.addr %s265, 8
        %s267 = scalar_lea.vmem [#allocation3], %s266
        %p268 = scmp.lt.s32.totalorder %s23, 1
        %s269 = scalar_select %p268, %s23, 1
        %s270 = smul.addr %s269, 8
        %s271 = scalar_lea.vmem %s0, %s270
        %p272 = scmp.lt.s32.totalorder %s24, 0
        %s273 = scalar_select %p272, %s24, 0
        %s274 = smul.addr %s273, 8
        %s275 = scalar_lea.vmem %s1, %s274
        %p276 = scmp.lt.s32.totalorder %s24, 0
        %s277 = scalar_select %p276, %s24, 0
        %s278 = scalar_lea.vmem %s2, %s277
        %s279 = smul.u32 16, %s24
        %p280 = scmp.lt.s32.totalorder %s279, 15
        %s281 = scalar_select %p280, %s279, 15
        %s282 = smul.addr %s281, 8
        %s283 = scalar_lea.vmem %s3, %s282
        %s284 = smul.u32 16, %s24
        %p285 = scmp.eq.s32.totalorder %s24, 0
        // Predicated region
        $region41: #{tpu_custom_call.1} parent=39 // pred_check
          %p286 = pneg %p285
        $region42: #{tpu_custom_call.1} parent=39 // pred_check_branch
          %288 = sbr.rel (%p286) target = $region44
        $region43: #{tpu_custom_call.1} parent=39 // pred_region
          %v289 = vld [vmem:[%s4] sm:$0x1]
          %v291 = vperm.slane %v289, 0
          %vm293 = vcmask 261120
          %294 = vst.msk [vmem:[#allocation2] sm:$0xff] %vm293, %v291
        $region44: #{tpu_custom_call.1} parent=39 // pred_fallthru
          _
        %v295 = vld [vmem:[%s271] sm:$0xff]
        %v296 = vld [vmem:[%s275] sm:$0xff]
        %v297 = vld [vmem:[%s275 + $0x8] sm:$0xff]
        %v298 = vld [vmem:[%s275 + $0x10] sm:$0xff]
        %v299 = vld [vmem:[%s275 + $0x18] sm:$0xff]
        %v300 = vld [vmem:[%s278] sm:$0x1]
        %v302 = vperm.slane %v300, 0
        %vm304 = vcmask 261120
        %v306 = vsel %vm304, %v295, 0
        %308 = vmatpush.msra.mxu0 0.0
        %309 = vmatpush.msra.mxu0 0.0
        %310 = vmatpush.msra.mxu0 0.0
        %311 = vmatpush.msra.mxu0 0.0
        %312 = vmatpush.msra.mxu0 0.0
        %313 = vmatpush.msra.mxu0 0.0
        %314 = vmatpush.msra.mxu0 0.0
        %315 = vmatpush.msra.mxu0 0.0
        %316 = vmatpush.msra.mxu0 0.0
        %317 = vmatpush.msra.mxu0 0.0
        %318 = vmatpush.msra.mxu0 0.0
        %319 = vmatpush.msra.mxu0 0.0
        %320 = vmatpush.msra.mxu0 %v299
        %321 = vmatpush.msra.mxu0 %v298
        %322 = vmatpush.msra.mxu0 %v297
        %323 = vmatpush.msra.mxu0 %v296
        %324 = vmatmul.f32.gmra.mxu0 %v306
        %v325 = vpop.f32.mrf.mxu0
        %v326 = vadd.f32 %v302, %v325
        %327 = vdwg.mxu0
        %v328 = vmul.f32 %v326, 0.5
        %v329 = vmul.f32 %v326, 0.044715
        %v330 = vmul.f32 %v329, %v326
        %v331 = vmul.f32 %v330, %v326
        %v332 = vadd.f32 %v326, %v331
        %v333 = vmul.f32 %v332, 0.7978846
        %v334 = vtanh.pop %v333
        %v335 = vadd.f32 %v334, 1.0
        %v336 = vmul.f32 %v328, %v335
        %v337 = vld [vmem:[#allocation2] sm:$0xff]
        %v338 = vld [vmem:[%s283] sm:$0xff]
        %v339 = vld [vmem:[%s283 + $0x8] sm:$0xff]
        %v340 = vld [vmem:[%s283 + $0x10] sm:$0xff]
        %v341 = vld [vmem:[%s283 + $0x18] sm:$0xff]
        %v342 = vld [vmem:[%s283 + $0x20] sm:$0xff]
        %v343 = vld [vmem:[%s283 + $0x28] sm:$0xff]
        %v344 = vld [vmem:[%s283 + $0x30] sm:$0xff]
        %v345 = vld [vmem:[%s283 + $0x38] sm:$0xff]
        %v346 = vld [vmem:[%s283 + $0x40] sm:$0xff]
        %v347 = vld [vmem:[%s283 + $0x48] sm:$0xff]
        %v348 = vld [vmem:[%s283 + $0x50] sm:$0xff]
        %v349 = vld [vmem:[%s283 + $0x58] sm:$0xff]
        %v350 = vld [vmem:[%s283 + $0x60] sm:$0xff]
        %v351 = vld [vmem:[%s283 + $0x68] sm:$0xff]
        %v352 = vld [vmem:[%s283 + $0x70] sm:$0xff]
        %v353 = vld [vmem:[%s283 + $0x78] sm:$0xff]
        %354 = vmatpush.msra.mxu0 %v353
        %355 = vmatpush.msra.mxu0 %v352
        %356 = vmatpush.msra.mxu0 %v351
        %357 = vmatpush.msra.mxu0 %v350
        %358 = vmatpush.msra.mxu0 %v349
        %359 = vmatpush.msra.mxu0 %v348
        %360 = vmatpush.msra.mxu0 %v347
        %361 = vmatpush.msra.mxu0 %v346
        %362 = vmatpush.msra.mxu0 %v345
        %363 = vmatpush.msra.mxu0 %v344
        %364 = vmatpush.msra.mxu0 %v343
        %365 = vmatpush.msra.mxu0 %v342
        %366 = vmatpush.msra.mxu0 %v341
        %367 = vmatpush.msra.mxu0 %v340
        %368 = vmatpush.msra.mxu0 %v339
        %369 = vmatpush.msra.mxu0 %v338
        %370 = vmatmul.f32.gmra.mxu0 %v336
        %v371 = vpop.f32.mrf.mxu0
        %v372 = vadd.f32 0.0, %v371
        %373 = vdwg.mxu0
        %v374 = vadd.f32 %v337, %v372
        %375 = vst.msk [vmem:[#allocation2] sm:$0xff] %vm304, %v374
        // Predicated region
        $region45: #{tpu_custom_call.1} parent=39 // pred_check
          %p376 = pneg %p285
        $region46: #{tpu_custom_call.1} parent=39 // pred_check_branch
          %378 = sbr.rel (%p376) target = $region48
        $region47: #{tpu_custom_call.1} parent=39 // pred_region
          %v379 = vld [vmem:[#allocation2] sm:$0xff]
          %380 = vst.msk [vmem:[%s267] sm:$0xff] %vm304, %v379
        $region48: #{tpu_custom_call.1} parent=39 // pred_fallthru
          _
        %s381 = sand.u32 %s164, 1
        %s382 = scalar_lea.sflag [#allocation4], %s381
        %s383 = sand.u32 %s164, 1
        %s384 = smul.addr %s383, 8
        %s385 = scalar_lea.vmem [#allocation3], %s384
        // Predicated region
        $region49: #{tpu_custom_call.1} parent=39 // pred_check
          %p386 = pneg %p174
        $region50: #{tpu_custom_call.1} parent=39 // pred_check_branch
          %388 = sbr.rel (%p386) target = $region52
        $region51: #{tpu_custom_call.1} parent=39 // pred_region
          %390 = vsyncadd %s382, 0
          %s391 = smul.addr %s23, 8
          %s392 = scalar_lea.hbm %s5, %s391
          %s394 = sshll.u32 %s385, 4
          %s395 = int_to_ptr.vmem [resolvable:$true] %s394
          %s396 = sshll.u32 %s392, 4
          %s397 = int_to_ptr.hbm [resolvable:$true] %s396
          %399 = dma.vmem_to_hbm [thread:$0]  %s395, 128, %s397, %s382
        $region52: #{tpu_custom_call.1} parent=39 // pred_fallthru
          _
      $region40: #{tpu_custom_call.1} parent=5 // pred_fallthru
        _
      %p400 = scmp.le.s32.totalorder 2, %s14
      // Predicated region
      $region53: #{tpu_custom_call.1} parent=5 // pred_check
        %p401 = pneg %p400
      $region54: #{tpu_custom_call.1} parent=5 // pred_check_branch
        %403 = sbr.rel (%p401) target = $region56
      $region55: #{tpu_custom_call.1} parent=5 // pred_region
        %s404 = ssub.s32 %s14, 2
        // Predicated region
        $region57: #{tpu_custom_call.1} parent=55 // pred_check
          %p405 = pneg %p180
        $region58: #{tpu_custom_call.1} parent=55 // pred_check_branch
          %407 = sbr.rel (%p405) target = $region60
        $region59: #{tpu_custom_call.1} parent=55 // pred_region
          %s408 = sand.u32 %s165, 1
          %s409 = scalar_lea.sflag [#allocation4], %s408
          %s410 = sand.u32 %s165, 1
          %s411 = smul.addr %s410, 8
          %s412 = scalar_lea.vmem [#allocation3], %s411
          %414 = dma.done %s409, 128
        $region60: #{tpu_custom_call.1} parent=55 // pred_fallthru
          _
      $region56: #{tpu_custom_call.1} parent=5 // pred_fallthru
        _
    $region6: #{tpu_custom_call.1} parent=1 // loop_footer
      %s18 = sadd.s32 1, %s14
    $region7: #{tpu_custom_call.1} parent=1 // loop_footer_branch
      %13 = sbr.rel target = $region3
    $region8: #{tpu_custom_call.1} parent=1 // loop_exit
      _
    %415 = vsyncpa [#allocation4], 1
    %s416 = scalar_lea.sflag [#allocation4], 1
    %417 = vsyncpa %s416, 1

</llo_original>
